<compile_context>
chip_gen: v7x
topology: tpu7x:2x2x1
jax: 0.10.0
libtpu: 0.0.40
codegen_flags: <defaults>
</compile_context>

<pallas_src>
import numpy as np
import jax
import jax.numpy as jnp
from jax.experimental import pallas as pl
from jax.experimental.pallas import tpu as pltpu

LRELU_SLOPE = 0.2
ID_SCALE = float(1.0 / np.sqrt(2.0))


def _lrelu(x):
    return jnp.where(x >= 0, x, LRELU_SLOPE * x)


# -----------------------------------------------------------------------------
# TPU / VMEM sizing helpers (generation-aware; conservative fallback).
# -----------------------------------------------------------------------------
def _tpu_vmem_capacity_bytes():
    try:
        info = pltpu.get_tpu_info()
        return int(getattr(info, "vmem_capacity_bytes", 64 << 20))
    except Exception:
        return 64 << 20  # v7x-sized fallback: safe on every generation.


# 48 MiB on v7x (64 MiB/TC), 96 MiB on v5e/v6e (128 MiB), never below 32 MiB.
_VMEM_LIMIT = max(min((_tpu_vmem_capacity_bytes() * 3) // 4, 100 << 20), 32 << 20)
# Per-grid-step working-set budget (the estimate below already counts 2x buffering).
_TILE_CAP = min((_VMEM_LIMIT * 3) // 5, 64 << 20)


def _rnd(v, m):
    return ((v + m - 1) // m) * m


def _est_vmem_bytes(t, w_sp, cin, cout, add_id, out_bytes):
    """Per-grid-step VMEM footprint: double-buffered in/out/id-bias blocks, the
    resident fused-weight block, the halo-window scratch and the large in-kernel
    temporaries, with physical (sublane, lane) padding included."""
    lane_in = _rnd(cin, 128)
    lane_k = _rnd(4 * cin, 128)
    lane_o = _rnd(2 * cout, 128)
    sub_in = _rnd(w_sp + 2, 16)          # bf16 sublane quantum
    sub_o = _rnd(w_sp, 8)
    main = 2 * t * sub_in * lane_in * 2
    halo = 2 * 2 * sub_in * lane_in * 2
    wgt = 2 * 4 * _rnd(4 * cin, 16) * _rnd(cout, 128) * 2
    outb = 2 * t * 2 * sub_o * lane_o * out_bytes
    idbb = (2 * t * 2 * sub_o * lane_o * 4) if add_id else 0
    scr = (t + 2) * sub_in * lane_in * 2
    tmp = t * sub_o * (2 * lane_k * 2 + 3 * lane_o * 4)
    return int(1.15 * (main + halo + wgt + outb + idbb + scr + tmp))


# -----------------------------------------------------------------------------
# encmod: Conv2dWN(16, 16, 1, 1, 0) + LeakyReLU(0.2)   (1x1 conv == per-pixel matmul)
# -----------------------------------------------------------------------------
def _encmod_kernel(x_ref, w_ref, b_ref, o_ref):
    y = jnp.dot(x_ref[...], w_ref[...], preferred_element_type=jnp.float32) + b_ref[0]
    o_ref[...] = _lrelu(y)


def encmod(ex_flat, w_cin_cout, b):
    # ex_flat: [N*16, 16] rows = (n, y, x); w_cin_cout: [16, 16]; b: [16]
    return pl.pallas_call(
        _encmod_kernel,
        out_shape=jax.ShapeDtypeStruct(ex_flat.shape, jnp.float32),
    )(ex_flat, w_cin_cout, b.reshape(1, -1))


# -----------------------------------------------------------------------------
# viewmod: LinearWN(3,16) + LeakyReLU + LinearWN(16, 8*4*4) + LeakyReLU
# -----------------------------------------------------------------------------
def _viewmod_kernel(v_ref, w1_ref, b1_ref, w2_ref, b2_ref, o_ref):
    h = _lrelu(jnp.dot(v_ref[...], w1_ref[...], preferred_element_type=jnp.float32) + b1_ref[0])
    h = _lrelu(jnp.dot(h, w2_ref[...], preferred_element_type=jnp.float32) + b2_ref[0])
    o_ref[...] = h


def viewmod(view, w1t, b1, w2t, b2):
    n = view.shape[0]
    return pl.pallas_call(
        _viewmod_kernel,
        out_shape=jax.ShapeDtypeStruct((n, 128), jnp.float32),
    )(view, w1t, b1.reshape(1, -1), w2t, b2.reshape(1, -1))


# -----------------------------------------------------------------------------
# ConvTranspose2d(cin, cout, kernel_size=4, stride=2, padding=1)
#   (+ optional LeakyReLU(0.2), + optional identity-bias add and 1/sqrt(2) scaling)
# -----------------------------------------------------------------------------
def _make_convt_kernel(tri, w_sp, cin, cout, add_id, apply_act, scale):
    def kernel(*refs):
        if add_id:
            main_ref, halo_ref, w_ref, b_ref, idb_ref, out_ref, xwin = refs
        else:
            main_ref, halo_ref, w_ref, b_ref, out_ref, xwin = refs
            idb_ref = None

        # Assemble the (tri+2, W+2, Cin) halo window in VMEM once per tile.  This is
        # the single HBM read of the activation (replaces 3 pre-shifted copies).
        xwin[0:tri, :, :] = main_ref[0]
        xwin[tri:tri + 2, :, :] = halo_ref[0]

        bias2 = b_ref[0]  # [2*cout] f32, hoisted out of the parity loop

        for py in range(2):
            ys = []
            for px in range(2):
                # K-fused patch: the four (dy, dx) taps concatenated along Cin
                # -> one MXU matmul per output parity with K = 4*Cin.
                patch = jnp.concatenate(
                    [xwin[py + dy:py + dy + tri, px + dx:px + dx + w_sp, :]
                     for dy in range(2) for dx in range(2)], axis=-1)
                y = jnp.dot(patch.reshape(tri * w_sp, 4 * cin),
                            w_ref[2 * py + px],
                            preferred_element_type=jnp.float32)
                ys.append(y)
            # Pack the two column parities into the lane dim (lane-denser store),
            # then bias -> LeakyReLU -> (+ id_bias) * 1/sqrt(2), all in f32.
            ycat = jnp.concatenate(ys, axis=-1) + bias2        # [tri*w_sp, 2*cout]
            if apply_act:
                ycat = _lrelu(ycat)
            ycat = ycat.reshape(tri, w_sp, 2 * cout)
            if add_id:
                ycat = (ycat + idb_ref[0, :, py, :, :]) * scale
            out_ref[0, :, py, :, :] = ycat.astype(out_ref.dtype)
    return kernel


def conv_transpose_4x4_s2_p1(x_nhwc, w, b, id_bias_nhwc, apply_act, out_dtype=jnp.bfloat16):
    """PyTorch ConvTranspose2d(cin, cout, 4, stride=2, padding=1) as a Pallas kernel.

    x_nhwc: [N, H, W, Cin]; w: [Cin, Cout, 4, 4] (PyTorch layout); b: [Cout];
    id_bias_nhwc: [N, 2H, 2W, Cb] or None (bias added + 1/sqrt(2) scale iff Cb == Cout).
    Returns NHWC [N, 2H, 2W, Cout] in `out_dtype` (the NHWC view is a free reshape of
    the kernel's [N, H, 2, W, 2*Cout] output layout).
    Output parity (py, px) uses kernel taps W[:, :, 3-py-2*dy, 3-px-2*dx].
    """
    n, h, w_sp, cin = x_nhwc.shape
    cout = w.shape[1]
    add_id = (id_bias_nhwc is not None) and (id_bias_nhwc.shape[-1] == cout)
    scale = ID_SCALE if add_id else 1.0

    # Sub-pixel weights, K-fused per output parity: [4 (=2py+px), 4*Cin, Cout], bf16.
    w_fused = jnp.stack([
        jnp.concatenate([w[:, :, 3 - py - 2 * dy, 3 - px - 2 * dx]
                         for dy in range(2) for dx in range(2)], axis=0)
        for py in range(2) for px in range(2)], axis=0).astype(jnp.bfloat16)
    b2 = jnp.concatenate([b, b]).reshape(1, 2 * cout).astype(jnp.float32)

    # Row-tile selection from a double-buffer-aware VMEM estimate.
    out_bytes = jnp.dtype(out_dtype).itemsize
    tri = h
    while tri > 2 and _est_vmem_bytes(tri, w_sp, cin, cout, add_id, out_bytes) > _TILE_CAP:
        tri //= 2
    hb = tri // 2
    grid = (n, h // tri)

    # Single zero-padded bf16 copy of the activation (rows rounded up so every
    # main / halo block index stays in range).
    pad_bottom = _rnd(h + 2, tri) - h - 1
    xpad = jnp.pad(x_nhwc.astype(jnp.bfloat16), ((0, 0), (1, pad_bottom), (1, 1), (0, 0)))

    in_specs = [
        # main row tile of the padded input: rows [r*tri, (r+1)*tri)
        pl.BlockSpec((1, tri, w_sp + 2, cin), lambda i, r: (i, r, 0, 0)),
        # 2-row bottom halo: rows [(r+1)*tri, (r+1)*tri + 2)
        pl.BlockSpec((1, 2, w_sp + 2, cin), lambda i, r: (i, (r + 1) * hb, 0, 0)),
        pl.BlockSpec((4, 4 * cin, cout), lambda i, r: (0, 0, 0)),
        pl.BlockSpec((1, 2 * cout), lambda i, r: (0, 0)),
    ]
    args = [xpad, xpad, w_fused, b2]
    if add_id:
        # NHWC [N, 2H, 2W, C] viewed as [N, H, 2, W, 2C] (free reshape): the kernel
        # reads each (py, px) parity with plain static indexing; no re-layout pass.
        idb = id_bias_nhwc.astype(jnp.float32).reshape(n, h, 2, w_sp, 2 * cout)
        in_specs.append(pl.BlockSpec((1, tri, 2, w_sp, 2 * cout),
                                     lambda i, r: (i, r, 0, 0, 0)))
        args.append(idb)

    out = pl.pallas_call(
        _make_convt_kernel(tri, w_sp, cin, cout, add_id, apply_act, scale),
        out_shape=jax.ShapeDtypeStruct((n, h, 2, w_sp, 2 * cout), out_dtype),
        grid=grid,
        in_specs=in_specs,
        out_specs=pl.BlockSpec((1, tri, 2, w_sp, 2 * cout), lambda i, r: (i, r, 0, 0, 0)),
        scratch_shapes=[pltpu.VMEM((tri + 2, w_sp + 2, cin), jnp.bfloat16)],
        compiler_params=pltpu.CompilerParams(
            dimension_semantics=("parallel", "parallel"),
            vmem_limit_bytes=int(_VMEM_LIMIT)),
    )(*args)

    # [N, H, 2, W, 2*Cout] row-major == NHWC [N, 2H, 2W, Cout]: free reshape, no transpose.
    # TODO(synk): the final layer (Cout = boxsize*outch = 6) still under-utilizes MXU N /
    # store lanes; an X @ W[Cin, 16*Cout] overlap-add formulation would fix that.
    return out.reshape(n, 2 * h, 2 * w_sp, cout)


# -----------------------------------------------------------------------------
# RGBDecoder: parameters + forward
# -----------------------------------------------------------------------------
def init_rgb_decoder_params(key, *, imsize, nboxes, boxsize, outch, viewcond=True):
    nh = int(np.sqrt(nboxes))
    assert nh * nh == nboxes
    assert nh * boxsize == imsize  # required by the final view/permute
    inch = 16 + 16 + (8 if viewcond else 0)
    if imsize == 1024:
        size = [inch, 256, 128, 128, 64, 64, 32, 16, boxsize * outch]
    elif imsize == 512:
        size = [inch, 256, 128, 128, 64, 64, 32, boxsize * outch]
    else:
        raise ValueError(f"Unsupported image size: {imsize}")
    nlayers = len(size) - 1
    keys = jax.random.split(key, 6 + 2 * nlayers)
    std = 0.05

    def nrm(k, shape, s=std):
        return s * jax.random.normal(k, shape, jnp.float32)

    params = {
        "enc_w": nrm(keys[0], (16, 16, 1, 1)),      # Conv2dWN(16,16,1,1,0) [Cout,Cin,1,1]
        "enc_b": nrm(keys[1], (16,), 0.01),
        "bias": jnp.zeros((boxsize * outch, imsize, imsize), jnp.float32),  # zeroed in __init__
        "conv_w": [],
        "conv_b": [],
    }
    if viewcond:
        params["view_w1"] = nrm(keys[2], (16, 3))    # LinearWN(3,16)  [out, in]
        params["view_b1"] = nrm(keys[3], (16,), 0.01)
        params["view_w2"] = nrm(keys[4], (128, 16))  # LinearWN(16, 8*4*4)
        params["view_b2"] = nrm(keys[5], (128,), 0.01)
    for i in range(nlayers):
        # ConvTranspose2dWN weight layout: [in_channels, out_channels, 4, 4]
        params["conv_w"].append(nrm(keys[6 + 2 * i], (size[i], size[i + 1], 4, 4)))
        params["conv_b"].append(nrm(keys[7 + 2 * i], (size[i + 1],), 0.01))
    cfg = dict(imsize=imsize, nboxes=nboxes, boxsize=boxsize, outch=outch,
               viewcond=viewcond, nlayers=nlayers, size=size)
    return params, cfg


def rgb_decoder_forward(params, cfg, ex_code, id_code, id_biases, view,
                        *, id_biases_channels_last=False):
    """Pallas port of RGBDecoder.forward.

    ex_code, id_code: [N, 16, 4, 4] (NCHW); view: [N, 3];
    id_biases: list of identity biases, one per deconv layer, NCHW [N, C_i, H_i, W_i]
    (or NHWC if id_biases_channels_last=True, which skips the conversion transpose).
    Returns [N, nboxes, boxsize, boxsize, boxsize, outch].
    """
    n = ex_code.shape[0]

    # encmod (Pallas): 1x1 conv over channels + LeakyReLU.
    ex_flat = jnp.transpose(ex_code, (0, 2, 3, 1)).reshape(n * 16, 16)
    z_flat = encmod(ex_flat, params["enc_w"][:, :, 0, 0].T, params["enc_b"])
    z_nhwc = z_flat.reshape(n, 4, 4, 16)

    x = z_nhwc
    if id_code is not None:
        x = jnp.concatenate([z_nhwc, jnp.transpose(id_code, (0, 2, 3, 1))], axis=-1)
    if cfg["viewcond"]:
        vvec = viewmod(view, params["view_w1"].T, params["view_b1"],
                       params["view_w2"].T, params["view_b2"])
        v_nhwc = jnp.transpose(vvec.reshape(n, 8, 4, 4), (0, 2, 3, 1))
        x = jnp.concatenate([v_nhwc, x], axis=-1)   # channel order [v, z, id]
    x = x.astype(jnp.bfloat16)                      # bf16 inter-layer activations

    nl = cfg["nlayers"]
    for i in range(nl):
        apply_act = i < nl - 1
        idb = id_biases[i]
        if idb is not None and not id_biases_channels_last:
            idb = jnp.transpose(idb, (0, 2, 3, 1))  # NCHW -> NHWC (single transpose)
        out_dtype = jnp.float32 if i == nl - 1 else jnp.bfloat16
        x = conv_transpose_4x4_s2_p1(x, params["conv_w"][i], params["conv_b"][i],
                                     idb, apply_act, out_dtype=out_dtype)

    # tex = x + bias (NHWC), then the exact PyTorch view/permute/reshape semantics.
    bias_nhwc = jnp.transpose(params["bias"], (1, 2, 0))
    tex = x + bias_nhwc[None]
    boxsize, outch, nboxes = cfg["boxsize"], cfg["outch"], cfg["nboxes"]
    hh = int(np.sqrt(nboxes))
    rgb = tex.reshape(n, hh, boxsize, hh, boxsize, boxsize, outch)
    rgb = jnp.transpose(rgb, (0, 1, 3, 5, 2, 4, 6))
    rgb = rgb.reshape(n, nboxes, boxsize, boxsize, boxsize, outch)
    return rgb


# -----------------------------------------------------------------------------
# Tiny numpy reference for the transposed conv (used only as a sanity check)
# -----------------------------------------------------------------------------
def _np_conv_transpose_ref(x, w, b):
    # x: [N, Cin, H, W]; w: [Cin, Cout, 4, 4]; b: [Cout]  (stride=2, padding=1)
    n, cin, h, w_sp = x.shape
    cout = w.shape[1]
    out = np.tile(b[None, :, None, None], (n, 1, 2 * h, 2 * w_sp)).astype(np.float64)
    for ky in range(4):
        for kx in range(4):
            for iy in range(h):
                oy = 2 * iy + ky - 1
                if not 0 <= oy < 2 * h:
                    continue
                for ix in range(w_sp):
                    ox = 2 * ix + kx - 1
                    if not 0 <= ox < 2 * w_sp:
                        continue
                    out[:, :, oy, ox] += (x[:, :, iy, ix].astype(np.float64)
                                          @ w[:, :, ky, kx].astype(np.float64))
    return out.astype(np.float32)


if __name__ == "__main__":
    # Faithful imsize=512 stack (7 deconv layers), small batch, boxsize=2 / outch=3
    #   => nboxes = (512/2)^2 = 65536, final channels = boxsize*outch = 6.
    imsize, boxsize, outch = 512, 2, 3
    nboxes = (imsize // boxsize) ** 2
    batch = 2

    root = jax.random.PRNGKey(0)
    kparam, kex, kid, kview, kbias, kchk = jax.random.split(root, 6)
    params, cfg = init_rgb_decoder_params(kparam, imsize=imsize, nboxes=nboxes,
                                          boxsize=boxsize, outch=outch, viewcond=True)

    ex_code = jax.random.normal(kex, (batch, 16, 4, 4), jnp.float32)
    id_code = jax.random.normal(kid, (batch, 16, 4, 4), jnp.float32)
    view = jax.random.normal(kview, (batch, 3), jnp.float32)

    # Identity biases: one per deconv layer (NCHW, as in the PyTorch module).
    id_biases = []
    bkeys = jax.random.split(kbias, cfg["nlayers"])
    sp = 8
    for i in range(cfg["nlayers"]):
        c_i = cfg["size"][i + 1]
        id_biases.append(0.1 * jax.random.normal(bkeys[i], (batch, c_i, sp, sp), jnp.float32))
        sp *= 2

    # Sanity check of the Pallas transposed-conv kernel vs. a tiny numpy reference
    # (matmuls run with bf16 inputs + f32 accumulation; tolerance accounts for that).
    ck0, ck1, ck2 = jax.random.split(kchk, 3)
    xc = jax.random.normal(ck0, (1, 8, 4, 4), jnp.float32)       # NCHW
    wc = jax.random.normal(ck1, (8, 16, 4, 4), jnp.float32)
    bc = jax.random.normal(ck2, (16,), jnp.float32)
    got = conv_transpose_4x4_s2_p1(jnp.transpose(xc, (0, 2, 3, 1)), wc, bc, None, False,
                                   out_dtype=jnp.float32)
    got = np.asarray(jnp.transpose(got, (0, 3, 1, 2)))
    want = _np_conv_transpose_ref(np.asarray(xc), np.asarray(wc), np.asarray(bc))
    np.testing.assert_allclose(got, want, rtol=3e-2, atol=3e-1)

    # Full forward (jitted so the remaining glue - pads, casts, reshapes - fuses).
    fwd = jax.jit(lambda p, ex, idc, idbs, vw: rgb_decoder_forward(p, cfg, ex, idc, idbs, vw))
    rgb = jax.block_until_ready(fwd(params, ex_code, id_code, id_biases, view))
    assert rgb.shape == (batch, nboxes, boxsize, boxsize, boxsize, outch), rgb.shape
    assert bool(jnp.all(jnp.isfinite(rgb)))
    print("KERNEL_OK")
</pallas_src>

<mosaic_0001>
module attributes {stable_mosaic.version = 11 : i64} {
  func.func @kernel(%arg0: i32, %arg1: i32, %arg2: memref<1x4x6x8xbf16, #tpu.memory_space<vmem>>, %arg3: memref<1x2x6x8xbf16, #tpu.memory_space<vmem>>, %arg4: memref<4x32x16xbf16, #tpu.memory_space<vmem>>, %arg5: memref<1x32xf32, #tpu.memory_space<vmem>>, %arg6: memref<1x4x2x4x32xf32, #tpu.memory_space<vmem>>, %arg7: memref<6x6x8xbf16, #tpu.memory_space<vmem>>) attributes {dimension_semantics = [#tpu.dimension_semantics<parallel>, #tpu.dimension_semantics<parallel>], iteration_bounds = array<i64: 1, 1>, scalar_prefetch = 0 : i64, scratch_operands = 1 : i64, tpu.core_type = #tpu.core_type<tc>, window_params = [{transform_indices = @transform_0, window_bounds = array<i64: 1, 4, 6, 8>}, {transform_indices = @transform_1, window_bounds = array<i64: 1, 2, 6, 8>}, {pipeline_mode = #tpu.pipeline_mode<synchronous>, transform_indices = @transform_2, window_bounds = array<i64: 4, 32, 16>}, {pipeline_mode = #tpu.pipeline_mode<synchronous>, transform_indices = @transform_3, window_bounds = array<i64: 1, 32>}, {transform_indices = @transform_4, window_bounds = array<i64: 1, 4, 2, 4, 32>}]} {
    %c0 = arith.constant 0 : index
    %c0_0 = arith.constant 0 : index
    %c0_1 = arith.constant 0 : index
    %c0_2 = arith.constant 0 : index
    %0 = vector.load %arg2[%c0, %c0_0, %c0_1, %c0_2] : memref<1x4x6x8xbf16, #tpu.memory_space<vmem>>, vector<1x4x6x8xbf16>
    %1 = vector.shape_cast %0 : vector<1x4x6x8xbf16> to vector<4x6x8xbf16>
    %c0_3 = arith.constant 0 : index
    %c0_4 = arith.constant 0 : index
    %c0_5 = arith.constant 0 : index
    %2 = vector.load %arg7[%c0_3, %c0_4, %c0_5] : memref<6x6x8xbf16, #tpu.memory_space<vmem>>, vector<4x6x8xbf16>
    tpu.vector_store %arg7[%c0_3, %c0_4, %c0_5], %1 {strides = array<i32>} : memref<6x6x8xbf16, #tpu.memory_space<vmem>>, vector<4x6x8xbf16>,
    %c0_6 = arith.constant 0 : index
    %c0_7 = arith.constant 0 : index
    %c0_8 = arith.constant 0 : index
    %c0_9 = arith.constant 0 : index
    %3 = vector.load %arg3[%c0_6, %c0_7, %c0_8, %c0_9] : memref<1x2x6x8xbf16, #tpu.memory_space<vmem>>, vector<1x2x6x8xbf16>
    %4 = vector.shape_cast %3 : vector<1x2x6x8xbf16> to vector<2x6x8xbf16>
    %c4 = arith.constant 4 : index
    %c0_10 = arith.constant 0 : index
    %c0_11 = arith.constant 0 : index
    %5 = vector.load %arg7[%c4, %c0_10, %c0_11] : memref<6x6x8xbf16, #tpu.memory_space<vmem>>, vector<2x6x8xbf16>
    tpu.vector_store %arg7[%c4, %c0_10, %c0_11], %4 {strides = array<i32>} : memref<6x6x8xbf16, #tpu.memory_space<vmem>>, vector<2x6x8xbf16>,
    %c0_12 = arith.constant 0 : index
    %c0_13 = arith.constant 0 : index
    %6 = vector.load %arg5[%c0_12, %c0_13] : memref<1x32xf32, #tpu.memory_space<vmem>>, vector<1x32xf32>
    %7 = vector.shape_cast %6 : vector<1x32xf32> to vector<32xf32>
    %c0_14 = arith.constant 0 : index
    %c0_15 = arith.constant 0 : index
    %c0_16 = arith.constant 0 : index
    %8 = vector.load %arg7[%c0_14, %c0_15, %c0_16] : memref<6x6x8xbf16, #tpu.memory_space<vmem>>, vector<4x4x8xbf16>
    %c0_17 = arith.constant 0 : index
    %c1 = arith.constant 1 : index
    %c0_18 = arith.constant 0 : index
    %9 = vector.load %arg7[%c0_17, %c1, %c0_18] : memref<6x6x8xbf16, #tpu.memory_space<vmem>>, vector<4x4x8xbf16>
    %c1_19 = arith.constant 1 : index
    %c0_20 = arith.constant 0 : index
    %c0_21 = arith.constant 0 : index
    %10 = vector.load %arg7[%c1_19, %c0_20, %c0_21] : memref<6x6x8xbf16, #tpu.memory_space<vmem>>, vector<4x4x8xbf16>
    %c1_22 = arith.constant 1 : index
    %c1_23 = arith.constant 1 : index
    %c0_24 = arith.constant 0 : index
    %11 = vector.load %arg7[%c1_22, %c1_23, %c0_24] : memref<6x6x8xbf16, #tpu.memory_space<vmem>>, vector<4x4x8xbf16>
    %12 = tpu.concatenate %8, %9, %10, %11 in 2 : vector<4x4x8xbf16>, vector<4x4x8xbf16>, vector<4x4x8xbf16>, vector<4x4x8xbf16> -> vector<4x4x32xbf16>
    %13 = vector.shape_cast %12 : vector<4x4x32xbf16> to vector<16x32xbf16>
    %c0_25 = arith.constant 0 : index
    %c0_26 = arith.constant 0 : index
    %c0_27 = arith.constant 0 : index
    %14 = vector.load %arg4[%c0_25, %c0_26, %c0_27] : memref<4x32x16xbf16, #tpu.memory_space<vmem>>, vector<1x32x16xbf16>
    %15 = vector.shape_cast %14 : vector<1x32x16xbf16> to vector<32x16xbf16>
    %cst = arith.constant dense<0.000000e+00> : vector<16x16xf32>
    %16 = tpu.matmul %13, %15, %cst {dimension_numbers = #tpu.dot_dimension_numbers<[1], [0], [0], [1], [0, 0, 1, 1], [], []>} : vector<16x32xbf16>, vector<32x16xbf16>, vector<16x16xf32> -> vector<16x16xf32>
    %c0_28 = arith.constant 0 : index
    %c1_29 = arith.constant 1 : index
    %c0_30 = arith.constant 0 : index
    %17 = vector.load %arg7[%c0_28, %c1_29, %c0_30] : memref<6x6x8xbf16, #tpu.memory_space<vmem>>, vector<4x4x8xbf16>
    %c0_31 = arith.constant 0 : index
    %c2 = arith.constant 2 : index
    %c0_32 = arith.constant 0 : index
    %18 = vector.load %arg7[%c0_31, %c2, %c0_32] : memref<6x6x8xbf16, #tpu.memory_space<vmem>>, vector<4x4x8xbf16>
    %c1_33 = arith.constant 1 : index
    %c1_34 = arith.constant 1 : index
    %c0_35 = arith.constant 0 : index
    %19 = vector.load %arg7[%c1_33, %c1_34, %c0_35] : memref<6x6x8xbf16, #tpu.memory_space<vmem>>, vector<4x4x8xbf16>
    %c1_36 = arith.constant 1 : index
    %c2_37 = arith.constant 2 : index
    %c0_38 = arith.constant 0 : index
    %20 = vector.load %arg7[%c1_36, %c2_37, %c0_38] : memref<6x6x8xbf16, #tpu.memory_space<vmem>>, vector<4x4x8xbf16>
    %21 = tpu.concatenate %17, %18, %19, %20 in 2 : vector<4x4x8xbf16>, vector<4x4x8xbf16>, vector<4x4x8xbf16>, vector<4x4x8xbf16> -> vector<4x4x32xbf16>
    %22 = vector.shape_cast %21 : vector<4x4x32xbf16> to vector<16x32xbf16>
    %c1_39 = arith.constant 1 : index
    %c0_40 = arith.constant 0 : index
    %c0_41 = arith.constant 0 : index
    %23 = vector.load %arg4[%c1_39, %c0_40, %c0_41] : memref<4x32x16xbf16, #tpu.memory_space<vmem>>, vector<1x32x16xbf16>
    %24 = vector.shape_cast %23 : vector<1x32x16xbf16> to vector<32x16xbf16>
    %cst_42 = arith.constant dense<0.000000e+00> : vector<16x16xf32>
    %25 = tpu.matmul %22, %24, %cst_42 {dimension_numbers = #tpu.dot_dimension_numbers<[1], [0], [0], [1], [0, 0, 1, 1], [], []>} : vector<16x32xbf16>, vector<32x16xbf16>, vector<16x16xf32> -> vector<16x16xf32>
    %26 = tpu.concatenate %16, %25 in 1 : vector<16x16xf32>, vector<16x16xf32> -> vector<16x32xf32>
    %27 = vector.shape_cast %7 : vector<32xf32> to vector<1x32xf32>
    %28 = vector.broadcast %27 : vector<1x32xf32> to vector<16x32xf32>
    %29 = arith.addf %26, %28 : vector<16x32xf32>
    %30 = vector.shape_cast %29 : vector<16x32xf32> to vector<4x4x32xf32>
    %c0_43 = arith.constant 0 : index
    %c0_44 = arith.constant 0 : index
    %c0_45 = arith.constant 0 : index
    %c0_46 = arith.constant 0 : index
    %c0_47 = arith.constant 0 : index
    %31 = vector.load %arg6[%c0_43, %c0_44, %c0_45, %c0_46, %c0_47] : memref<1x4x2x4x32xf32, #tpu.memory_space<vmem>>, vector<1x4x1x4x32xf32>
    %32 = vector.shape_cast %31 : vector<1x4x1x4x32xf32> to vector<4x4x32xf32>
    %33 = vector.shape_cast %30 : vector<4x4x32xf32> to vector<1x4x1x4x32xf32>
    tpu.vector_store %arg6[%c0_43, %c0_44, %c0_45, %c0_46, %c0_47], %33 {strides = array<i32>} : memref<1x4x2x4x32xf32, #tpu.memory_space<vmem>>, vector<1x4x1x4x32xf32>,
    %c1_48 = arith.constant 1 : index
    %c0_49 = arith.constant 0 : index
    %c0_50 = arith.constant 0 : index
    %34 = vector.load %arg7[%c1_48, %c0_49, %c0_50] : memref<6x6x8xbf16, #tpu.memory_space<vmem>>, vector<4x4x8xbf16>
    %c1_51 = arith.constant 1 : index
    %c1_52 = arith.constant 1 : index
    %c0_53 = arith.constant 0 : index
    %35 = vector.load %arg7[%c1_51, %c1_52, %c0_53] : memref<6x6x8xbf16, #tpu.memory_space<vmem>>, vector<4x4x8xbf16>
    %c2_54 = arith.constant 2 : index
    %c0_55 = arith.constant 0 : index
    %c0_56 = arith.constant 0 : index
    %36 = vector.load %arg7[%c2_54, %c0_55, %c0_56] : memref<6x6x8xbf16, #tpu.memory_space<vmem>>, vector<4x4x8xbf16>
    %c2_57 = arith.constant 2 : index
    %c1_58 = arith.constant 1 : index
    %c0_59 = arith.constant 0 : index
    %37 = vector.load %arg7[%c2_57, %c1_58, %c0_59] : memref<6x6x8xbf16, #tpu.memory_space<vmem>>, vector<4x4x8xbf16>
    %38 = tpu.concatenate %34, %35, %36, %37 in 2 : vector<4x4x8xbf16>, vector<4x4x8xbf16>, vector<4x4x8xbf16>, vector<4x4x8xbf16> -> vector<4x4x32xbf16>
    %39 = vector.shape_cast %38 : vector<4x4x32xbf16> to vector<16x32xbf16>
    %c2_60 = arith.constant 2 : index
    %c0_61 = arith.constant 0 : index
    %c0_62 = arith.constant 0 : index
    %40 = vector.load %arg4[%c2_60, %c0_61, %c0_62] : memref<4x32x16xbf16, #tpu.memory_space<vmem>>, vector<1x32x16xbf16>
    %41 = vector.shape_cast %40 : vector<1x32x16xbf16> to vector<32x16xbf16>
    %cst_63 = arith.constant dense<0.000000e+00> : vector<16x16xf32>
    %42 = tpu.matmul %39, %41, %cst_63 {dimension_numbers = #tpu.dot_dimension_numbers<[1], [0], [0], [1], [0, 0, 1, 1], [], []>} : vector<16x32xbf16>, vector<32x16xbf16>, vector<16x16xf32> -> vector<16x16xf32>
    %c1_64 = arith.constant 1 : index
    %c1_65 = arith.constant 1 : index
    %c0_66 = arith.constant 0 : index
    %43 = vector.load %arg7[%c1_64, %c1_65, %c0_66] : memref<6x6x8xbf16, #tpu.memory_space<vmem>>, vector<4x4x8xbf16>
    %c1_67 = arith.constant 1 : index
    %c2_68 = arith.constant 2 : index
    %c0_69 = arith.constant 0 : index
    %44 = vector.load %arg7[%c1_67, %c2_68, %c0_69] : memref<6x6x8xbf16, #tpu.memory_space<vmem>>, vector<4x4x8xbf16>
    %c2_70 = arith.constant 2 : index
    %c1_71 = arith.constant 1 : index
    %c0_72 = arith.constant 0 : index
    %45 = vector.load %arg7[%c2_70, %c1_71, %c0_72] : memref<6x6x8xbf16, #tpu.memory_space<vmem>>, vector<4x4x8xbf16>
    %c2_73 = arith.constant 2 : index
    %c2_74 = arith.constant 2 : index
    %c0_75 = arith.constant 0 : index
    %46 = vector.load %arg7[%c2_73, %c2_74, %c0_75] : memref<6x6x8xbf16, #tpu.memory_space<vmem>>, vector<4x4x8xbf16>
    %47 = tpu.concatenate %43, %44, %45, %46 in 2 : vector<4x4x8xbf16>, vector<4x4x8xbf16>, vector<4x4x8xbf16>, vector<4x4x8xbf16> -> vector<4x4x32xbf16>
    %48 = vector.shape_cast %47 : vector<4x4x32xbf16> to vector<16x32xbf16>
    %c3 = arith.constant 3 : index
    %c0_76 = arith.constant 0 : index
    %c0_77 = arith.constant 0 : index
    %49 = vector.load %arg4[%c3, %c0_76, %c0_77] : memref<4x32x16xbf16, #tpu.memory_space<vmem>>, vector<1x32x16xbf16>
    %50 = vector.shape_cast %49 : vector<1x32x16xbf16> to vector<32x16xbf16>
    %cst_78 = arith.constant dense<0.000000e+00> : vector<16x16xf32>
    %51 = tpu.matmul %48, %50, %cst_78 {dimension_numbers = #tpu.dot_dimension_numbers<[1], [0], [0], [1], [0, 0, 1, 1], [], []>} : vector<16x32xbf16>, vector<32x16xbf16>, vector<16x16xf32> -> vector<16x16xf32>
    %52 = tpu.concatenate %42, %51 in 1 : vector<16x16xf32>, vector<16x16xf32> -> vector<16x32xf32>
    %53 = vector.shape_cast %7 : vector<32xf32> to vector<1x32xf32>
    %54 = vector.broadcast %53 : vector<1x32xf32> to vector<16x32xf32>
    %55 = arith.addf %52, %54 : vector<16x32xf32>
    %56 = vector.shape_cast %55 : vector<16x32xf32> to vector<4x4x32xf32>
    %c0_79 = arith.constant 0 : index
    %c0_80 = arith.constant 0 : index
    %c1_81 = arith.constant 1 : index
    %c0_82 = arith.constant 0 : index
    %c0_83 = arith.constant 0 : index
    %57 = vector.load %arg6[%c0_79, %c0_80, %c1_81, %c0_82, %c0_83] : memref<1x4x2x4x32xf32, #tpu.memory_space<vmem>>, vector<1x4x1x4x32xf32>
    %58 = vector.shape_cast %57 : vector<1x4x1x4x32xf32> to vector<4x4x32xf32>
    %59 = vector.shape_cast %56 : vector<4x4x32xf32> to vector<1x4x1x4x32xf32>
    tpu.vector_store %arg6[%c0_79, %c0_80, %c1_81, %c0_82, %c0_83], %59 {strides = array<i32>} : memref<1x4x2x4x32xf32, #tpu.memory_space<vmem>>, vector<1x4x1x4x32xf32>,
    return
  }
  func.func @transform_0(%arg0: i32, %arg1: i32) -> (i32, i32, i32, i32) {
    %c0_i32 = arith.constant 0 : i32
    %c0_i32_0 = arith.constant 0 : i32
    %c0_i32_1 = arith.constant 0 : i32
    return %arg0, %arg1, %c0_i32, %c0_i32_0 : i32, i32, i32, i32
  }
  func.func @transform_1(%arg0: i32, %arg1: i32) -> (i32, i32, i32, i32) {
    %c1_i32 = arith.constant 1 : i32
    %0 = arith.addi %arg1, %c1_i32 : i32
    %c2_i32 = arith.constant 2 : i32
    %1 = arith.muli %0, %c2_i32 : i32
    %c0_i32 = arith.constant 0 : i32
    %c0_i32_0 = arith.constant 0 : i32
    %c0_i32_1 = arith.constant 0 : i32
    return %arg0, %1, %c0_i32, %c0_i32_0 : i32, i32, i32, i32
  }
  func.func @transform_2(%arg0: i32, %arg1: i32) -> (i32, i32, i32) {
    %c0_i32 = arith.constant 0 : i32
    %c0_i32_0 = arith.constant 0 : i32
    %c0_i32_1 = arith.constant 0 : i32
    %c0_i32_2 = arith.constant 0 : i32
    return %c0_i32, %c0_i32_0, %c0_i32_1 : i32, i32, i32
  }
  func.func @transform_3(%arg0: i32, %arg1: i32) -> (i32, i32) {
    %c0_i32 = arith.constant 0 : i32
    %c0_i32_0 = arith.constant 0 : i32
    %c0_i32_1 = arith.constant 0 : i32
    return %c0_i32, %c0_i32_0 : i32, i32
  }
  func.func @transform_4(%arg0: i32, %arg1: i32) -> (i32, i32, i32, i32, i32) {
    %c0_i32 = arith.constant 0 : i32
    %c0_i32_0 = arith.constant 0 : i32
    %c0_i32_1 = arith.constant 0 : i32
    %c0_i32_2 = arith.constant 0 : i32
    return %arg0, %arg1, %c0_i32, %c0_i32_0, %c0_i32_1 : i32, i32, i32, i32, i32
  }
}

</mosaic_0001>

<llo_original>
// kernel: tpu_custom_call.1
$region0: #{tpu_custom_call.1}
  #allocation0 [shape = 'u32[]', space=smem, size = 0x4, offset = 0x4, fixed_abs, tag = 'smem constant byte address 0x4 - core index']
  #allocation1 [shape = 'u32[144,128]{1,0:T(1,128)}', space=vmem, size = 0x12000, scoped, tag = 'internal scratch']
  #allocation2 [shape = 'bf16[6,6,8]{2,1,0:T(8,128)(2,1)}', space=vmem, size = 0x3000, scoped, tag = 'scratch operand']
  %s0 = inlined_call_operand.vmem [shape: bf16[1,8,6,8], index: 0, kind: input, shape index: {}]
  %s1 = inlined_call_operand.vmem [shape: bf16[1,8,6,8], index: 1, kind: input, shape index: {}]
  %s2 = inlined_call_operand.vmem [shape: bf16[4,32,16], index: 2, kind: input, shape index: {}]
  %s3 = inlined_call_operand.vmem [shape: f32[1,32], index: 3, kind: input, shape index: {}]
  %s4 = inlined_call_operand.hbm [shape: f32[1,4,2,4,32], index: 4, kind: output, shape index: {}]
  %s5 = sld [smem:[#allocation0]]
  $region26: #{tpu_custom_call.1} parent=0
    _
  %s7 = ssub.s32 1, %s5
  %s8 = scalar_select 0, %s7, %s5
  $region1: #{tpu_custom_call.1} parent=0
    #allocation3 [shape = 'u8[16384]{0}', space=vmem, size = 0x4000, scoped, tag = 'output window, operand 0, single buffered']
    #allocation4 [shape = 's32[1]{0}', space=sflag, size = 0x4, scoped, tag = 'scoped memory for tpu_custom_call.1']
    %9 = vsyncpa [#allocation4], 0
    // Predicated region
    $region2: #{tpu_custom_call.1} parent=1 // pred_check
      _
    $region3: #{tpu_custom_call.1} parent=1 // pred_check_branch
      %11 = sbr.rel (0) target = $region5
    $region4: #{tpu_custom_call.1} parent=1 // pred_region
      _
    $region5: #{tpu_custom_call.1} parent=1 // pred_fallthru
      _
    // Predicated region
    $region6: #{tpu_custom_call.1} parent=1 // pred_check
      _
    $region7: #{tpu_custom_call.1} parent=1 // pred_check_branch
      %13 = sbr.rel (0) target = $region9
    $region8: #{tpu_custom_call.1} parent=1 // pred_region
      %s14 = sadd.s32 0, 1
      %s15 = smul.u32 %s14, 2
      %s16 = smul.u32 2, %s15
      %p17 = scmp.lt.s32.totalorder %s16, 7
      %s18 = scalar_select %p17, %s16, 7
      %s19 = smul.addr %s18, 4
      %s20 = scalar_lea.vmem %s1, %s19
      %s21 = sadd.s32 0, 1
      %s22 = smul.u32 %s21, 2
      %s23 = smul.u32 2, %s22
    $region9: #{tpu_custom_call.1} parent=1 // pred_fallthru
      _
    // Predicated region
    $region10: #{tpu_custom_call.1} parent=1 // pred_check
      _
    $region11: #{tpu_custom_call.1} parent=1 // pred_check_branch
      %25 = sbr.rel (0) target = $region13
    $region12: #{tpu_custom_call.1} parent=1 // pred_region
      _
    $region13: #{tpu_custom_call.1} parent=1 // pred_fallthru
      _
    // Predicated region
    $region14: #{tpu_custom_call.1} parent=1 // pred_check
      _
    $region15: #{tpu_custom_call.1} parent=1 // pred_check_branch
      %27 = sbr.rel (0) target = $region17
    $region16: #{tpu_custom_call.1} parent=1 // pred_region
      _
    $region17: #{tpu_custom_call.1} parent=1 // pred_fallthru
      _
    %s28 = sadd.s32 0, 1
    %s29 = smul.u32 %s28, 2
    %s30 = smul.u32 2, %s29
    %p31 = scmp.lt.s32.totalorder %s30, 7
    %s32 = scalar_select %p31, %s30, 7
    %s33 = smul.addr %s32, 4
    %s34 = scalar_lea.vmem %s1, %s33
    %s35 = sadd.s32 0, 1
    %s36 = smul.u32 %s35, 2
    %s37 = smul.u32 2, %s36
    %p38 = scmp.lt.s32.totalorder %s37, 7
    %s39 = scalar_select %p38, %s37, 7
    %s40 = smul.addr %s39, 4
    %s41 = scalar_lea.vmem %s1, %s40
    %s42 = sadd.s32 0, 1
    %s43 = smul.u32 %s42, 2
    %s44 = smul.u32 2, %s43
    %v46 = vld [vmem:[%s0] sm:$0x7]
    %v47 = vld [vmem:[%s0 + $0x4] sm:$0x7]
    %v48 = vld [vmem:[%s0 + $0x8] sm:$0x7]
    %v49 = vld [vmem:[%s0 + $0xc] sm:$0x7]
    %vm50 = vcmask 59392
    %51 = vst.msk [vmem:[#allocation2] sm:$0x7] %vm50, %v46
    %52 = vst.msk [vmem:[#allocation2 + $0x4] sm:$0x7] %vm50, %v47
    %53 = vst.msk [vmem:[#allocation2 + $0x8] sm:$0x7] %vm50, %v48
    %54 = vst.msk [vmem:[#allocation2 + $0xc] sm:$0x7] %vm50, %v49
    %v55 = vld [vmem:[%s41] sm:$0x7]
    %v56 = vld [vmem:[%s41 + $0x4] sm:$0x7]
    %s57 = scalar_lea.vmem [#allocation2], 16
    %58 = vst.msk [vmem:[%s57] sm:$0x7] %vm50, %v55
    %59 = vst.msk [vmem:[%s57 + $0x4] sm:$0x7] %vm50, %v56
    %v60 = vld [vmem:[%s3] sm:$0x1]
    %v61 = vld [vmem:[#allocation2] sm:$0x3]
    %v62 = vld [vmem:[#allocation2 + $0x4] sm:$0x3]
    %v63 = vld [vmem:[#allocation2 + $0x8] sm:$0x3]
    %v64 = vld [vmem:[#allocation2 + $0xc] sm:$0x3]
    %v65 = vld [vmem:[#allocation2] sm:$0x7]
    %v66 = vld [vmem:[#allocation2 + $0x4] sm:$0x7]
    %v67 = vld [vmem:[#allocation2 + $0x8] sm:$0x7]
    %v68 = vld [vmem:[#allocation2 + $0xc] sm:$0x7]
    %s69 = scalar_lea.vmem [#allocation2], 4
    %v70 = vld [vmem:[%s69] sm:$0x3]
    %v71 = vld [vmem:[%s69 + $0x4] sm:$0x3]
    %v72 = vld [vmem:[%s69 + $0x8] sm:$0x3]
    %v73 = vld [vmem:[%s69 + $0xc] sm:$0x3]
    %v74 = vld [vmem:[%s69] sm:$0x7]
    %v75 = vld [vmem:[%s69 + $0x4] sm:$0x7]
    %v76 = vld [vmem:[%s69 + $0x8] sm:$0x7]
    %v77 = vld [vmem:[%s69 + $0xc] sm:$0x7]
    %v82 = vunpack.c.l.b16 %v65
    %v83 = vunpack.c.l.b16 %v66
    %v84 = vunpack.c.l.b16 %v67
    %v85 = vunpack.c.l.b16 %v68
    %v86 = vpack.c.b16 %v82, %v82
    %v87 = vpack.c.b16 %v83, %v83
    %v88 = vpack.c.b16 %v84, %v84
    %v89 = vpack.c.b16 %v85, %v85
    %v91 = vshrl.u32 %v86, 16
    %v93 = vshll.u32 %v86, 16
    %v95 = vrot.slane %v93, 1
    %v96 = vor.u32 %v91, %v95
    %v98 = vshrl.u32 %v87, 16
    %v100 = vshll.u32 %v87, 16
    %v102 = vrot.slane %v100, 1
    %v103 = vor.u32 %v98, %v102
    %v105 = vshrl.u32 %v88, 16
    %v107 = vshll.u32 %v88, 16
    %v109 = vrot.slane %v107, 1
    %v110 = vor.u32 %v105, %v109
    %v112 = vshrl.u32 %v89, 16
    %v114 = vshll.u32 %v89, 16
    %v116 = vrot.slane %v114, 1
    %v117 = vor.u32 %v112, %v116
    %118 = vrot.lane.b32.xlu0 %v96, 8
    %v119 = vpop.permute.xlu0 %118
    %120 = vrot.lane.b32.xlu0 %v103, 8
    %v121 = vpop.permute.xlu0 %120
    %122 = vrot.lane.b32.xlu0 %v110, 8
    %v123 = vpop.permute.xlu0 %122
    %124 = vrot.lane.b32.xlu0 %v117, 8
    %v125 = vpop.permute.xlu0 %124
    %v130 = vunpack.c.l.b16 %v70
    %v131 = vunpack.c.l.b16 %v71
    %v132 = vunpack.c.l.b16 %v72
    %v133 = vunpack.c.l.b16 %v73
    %v134 = vpack.c.b16 %v130, %v130
    %v135 = vpack.c.b16 %v131, %v131
    %v136 = vpack.c.b16 %v132, %v132
    %v137 = vpack.c.b16 %v133, %v133
    %138 = vrot.lane.b32.xlu0 %v134, 16
    %v139 = vpop.permute.xlu0 %138
    %140 = vrot.lane.b32.xlu0 %v135, 16
    %v141 = vpop.permute.xlu0 %140
    %142 = vrot.lane.b32.xlu0 %v136, 16
    %v143 = vpop.permute.xlu0 %142
    %144 = vrot.lane.b32.xlu0 %v137, 16
    %v145 = vpop.permute.xlu0 %144
    %v150 = vunpack.c.l.b16 %v74
    %v151 = vunpack.c.l.b16 %v75
    %v152 = vunpack.c.l.b16 %v76
    %v153 = vunpack.c.l.b16 %v77
    %v154 = vpack.c.b16 %v150, %v150
    %v155 = vpack.c.b16 %v151, %v151
    %v156 = vpack.c.b16 %v152, %v152
    %v157 = vpack.c.b16 %v153, %v153
    %v159 = vshrl.u32 %v154, 16
    %v161 = vshll.u32 %v154, 16
    %v163 = vrot.slane %v161, 1
    %v164 = vor.u32 %v159, %v163
    %v166 = vshrl.u32 %v155, 16
    %v168 = vshll.u32 %v155, 16
    %v170 = vrot.slane %v168, 1
    %v171 = vor.u32 %v166, %v170
    %v173 = vshrl.u32 %v156, 16
    %v175 = vshll.u32 %v156, 16
    %v177 = vrot.slane %v175, 1
    %v178 = vor.u32 %v173, %v177
    %v180 = vshrl.u32 %v157, 16
    %v182 = vshll.u32 %v157, 16
    %v184 = vrot.slane %v182, 1
    %v185 = vor.u32 %v180, %v184
    %186 = vrot.lane.b32.xlu0 %v164, 24
    %v187 = vpop.permute.xlu0 %186
    %188 = vrot.lane.b32.xlu0 %v171, 24
    %v189 = vpop.permute.xlu0 %188
    %190 = vrot.lane.b32.xlu0 %v178, 24
    %v191 = vpop.permute.xlu0 %190
    %192 = vrot.lane.b32.xlu0 %v185, 24
    %v193 = vpop.permute.xlu0 %192
    %vm194 = vcmask 64512
    %v197 = vsel %vm194, %v61, %v119
    %v200 = vsel %vm194, %v62, %v121
    %v203 = vsel %vm194, %v63, %v123
    %v206 = vsel %vm194, %v64, %v125
    %vm207 = vcmask 130048
    %v209 = vsel %vm207, %v197, %v139
    %v211 = vsel %vm207, %v200, %v141
    %v213 = vsel %vm207, %v203, %v143
    %v215 = vsel %vm207, %v206, %v145
    %vm216 = vcmask 195584
    %v218 = vsel %vm216, %v209, %v187
    %v220 = vsel %vm216, %v211, %v189
    %v222 = vsel %vm216, %v213, %v191
    %v224 = vsel %vm216, %v215, %v193
    %v225 = vld [vmem:[%s2] sm:$0xf]
    %v226 = vld [vmem:[%s2 + $0x4] sm:$0xf]
    %v227 = vld [vmem:[%s2 + $0x8] sm:$0xf]
    %v228 = vld [vmem:[%s2 + $0xc] sm:$0xf]
    %v233 = vcombine.low %v218, %v220
    %v234 = vcombine.low %v222, %v224
    %v236 = vunpack.c.l.s4 1983009808
    %v237 = vunpack.c.0.s8 %v236
    %v238 = vlaneseq
    %v239 = vshrl.u32 %v238, 7
    %v240 = vsub.s32 %v237, %v239
    %v241 = vrot.slane %v233, %v240
    %v243 = vunpack.c.l.s4 1983009808
    %v244 = vunpack.c.0.s8 %v243
    %v245 = vlaneseq
    %v246 = vshrl.u32 %v245, 7
    %v247 = vsub.s32 %v244, %v246
    %v248 = vrot.slane %v234, %v247
    %v249 = vcombine.low %v241, %v248
    %v254 = vunpack.c.l.b16 %v225
    %v255 = vunpack.c.l.b16 %v226
    %v256 = vunpack.c.l.b16 %v227
    %v257 = vunpack.c.l.b16 %v228
    %v258 = vpack.c.b16 %v255, %v254
    %v259 = vpack.c.b16 %v257, %v256
    %vm262 = vcmask 261120
    %v264 = vsel %vm262, %v249, 0
    %266 = vmatprep.subr.bf16.mxu0 0
    %267 = vmatpush1.bf16.msra.mxu0 %v258
    %268 = vmatprep.subr.bf16.mxu0 0
    %269 = vmatpush1.bf16.msra.mxu0 %v259
    %270 = vmatprep.subr.bf16.mxu0 0
    %271 = vmatpush1.bf16.msra.mxu0 0
    %272 = vmatprep.subr.bf16.mxu0 0
    %273 = vmatpush1.bf16.msra.mxu0 0
    %274 = vmatprep.subr.bf16.mxu0 0
    %275 = vmatpush1.bf16.msra.mxu0 0
    %276 = vmatprep.subr.bf16.mxu0 0
    %277 = vmatpush1.bf16.msra.mxu0 0
    %278 = vmatprep.subr.bf16.mxu0 0
    %279 = vmatpush1.bf16.msra.mxu0 0
    %280 = vmatprep.subr.bf16.mxu0 0
    %281 = vmatpush1.bf16.msra.mxu0 0
    %282 = vmatprep.subr.bf16.mxu0 0
    %283 = vmatpush1.bf16.msra.mxu0 0
    %284 = vmatprep.subr.bf16.mxu0 0
    %285 = vmatpush1.bf16.msra.mxu0 0
    %286 = vmatprep.subr.bf16.mxu0 0
    %287 = vmatpush1.bf16.msra.mxu0 0
    %288 = vmatprep.subr.bf16.mxu0 0
    %289 = vmatpush1.bf16.msra.mxu0 0
    %290 = vmatprep.subr.bf16.mxu0 0
    %291 = vmatpush1.bf16.msra.mxu0 0
    %292 = vmatprep.subr.bf16.mxu0 0
    %293 = vmatpush1.bf16.msra.mxu0 0
    %294 = vmatprep.subr.bf16.mxu0 0
    %295 = vmatpush1.bf16.msra.mxu0 0
    %296 = vmatprep.subr.bf16.mxu0 0
    %297 = vmatpush1.bf16.msra.mxu0 0
    %298 = vmatprep.mubr.bf16.mxu0 0
    %299 = vmatmul.mubr.bf16.gmra.mrb[0].mxu0 %v264
    %v300 = vpop.f32.mrb[0].mxu0
    %v301 = vadd.f32 0.0, %v300
    %v302 = vpop.f32.mrb[0].mxu0
    %v303 = vpop.f32.mrb[0].mxu0
    %v304 = vadd.f32 0.0, %v303
    %v305 = vpop.f32.mrb[0].mxu0
    %306 = vdwg.mxu0
    %v307 = vld [vmem:[#allocation2] sm:$0x6]
    %v308 = vld [vmem:[#allocation2 + $0x4] sm:$0x6]
    %v309 = vld [vmem:[#allocation2 + $0x8] sm:$0x6]
    %v310 = vld [vmem:[#allocation2 + $0xc] sm:$0x6]
    %v311 = vld [vmem:[%s69] sm:$0x6]
    %v312 = vld [vmem:[%s69 + $0x4] sm:$0x6]
    %v313 = vld [vmem:[%s69 + $0x8] sm:$0x6]
    %v314 = vld [vmem:[%s69 + $0xc] sm:$0x6]
    %v319 = vunpack.c.l.b16 %v307
    %v320 = vunpack.c.l.b16 %v308
    %v321 = vunpack.c.l.b16 %v309
    %v322 = vunpack.c.l.b16 %v310
    %v323 = vpack.c.b16 %v319, %v319
    %v324 = vpack.c.b16 %v320, %v320
    %v325 = vpack.c.b16 %v321, %v321
    %v326 = vpack.c.b16 %v322, %v322
    %v328 = vshrl.u32 %v323, 16
    %v330 = vshll.u32 %v323, 16
    %v332 = vrot.slane %v330, 1
    %v333 = vor.u32 %v328, %v332
    %v335 = vshrl.u32 %v324, 16
    %v337 = vshll.u32 %v324, 16
    %v339 = vrot.slane %v337, 1
    %v340 = vor.u32 %v335, %v339
    %v342 = vshrl.u32 %v325, 16
    %v344 = vshll.u32 %v325, 16
    %v346 = vrot.slane %v344, 1
    %v347 = vor.u32 %v342, %v346
    %v349 = vshrl.u32 %v326, 16
    %v351 = vshll.u32 %v326, 16
    %v353 = vrot.slane %v351, 1
    %v354 = vor.u32 %v349, %v353
    %355 = vrot.lane.b32.xlu0 %v333, 8
    %v356 = vpop.permute.xlu0 %355
    %357 = vrot.lane.b32.xlu0 %v340, 8
    %v358 = vpop.permute.xlu0 %357
    %359 = vrot.lane.b32.xlu0 %v347, 8
    %v360 = vpop.permute.xlu0 %359
    %361 = vrot.lane.b32.xlu0 %v354, 8
    %v362 = vpop.permute.xlu0 %361
    %363 = vrot.lane.b32.xlu0 %v154, 16
    %v364 = vpop.permute.xlu0 %363
    %365 = vrot.lane.b32.xlu0 %v155, 16
    %v366 = vpop.permute.xlu0 %365
    %367 = vrot.lane.b32.xlu0 %v156, 16
    %v368 = vpop.permute.xlu0 %367
    %369 = vrot.lane.b32.xlu0 %v157, 16
    %v370 = vpop.permute.xlu0 %369
    %v375 = vunpack.c.l.b16 %v311
    %v376 = vunpack.c.l.b16 %v312
    %v377 = vunpack.c.l.b16 %v313
    %v378 = vunpack.c.l.b16 %v314
    %v379 = vpack.c.b16 %v375, %v375
    %v380 = vpack.c.b16 %v376, %v376
    %v381 = vpack.c.b16 %v377, %v377
    %v382 = vpack.c.b16 %v378, %v378
    %v384 = vshrl.u32 %v379, 16
    %v386 = vshll.u32 %v379, 16
    %v388 = vrot.slane %v386, 1
    %v389 = vor.u32 %v384, %v388
    %v391 = vshrl.u32 %v380, 16
    %v393 = vshll.u32 %v380, 16
    %v395 = vrot.slane %v393, 1
    %v396 = vor.u32 %v391, %v395
    %v398 = vshrl.u32 %v381, 16
    %v400 = vshll.u32 %v381, 16
    %v402 = vrot.slane %v400, 1
    %v403 = vor.u32 %v398, %v402
    %v405 = vshrl.u32 %v382, 16
    %v407 = vshll.u32 %v382, 16
    %v409 = vrot.slane %v407, 1
    %v410 = vor.u32 %v405, %v409
    %411 = vrot.lane.b32.xlu0 %v389, 24
    %v412 = vpop.permute.xlu0 %411
    %413 = vrot.lane.b32.xlu0 %v396, 24
    %v414 = vpop.permute.xlu0 %413
    %415 = vrot.lane.b32.xlu0 %v403, 24
    %v416 = vpop.permute.xlu0 %415
    %417 = vrot.lane.b32.xlu0 %v410, 24
    %v418 = vpop.permute.xlu0 %417
    %v421 = vsel %vm194, %v65, %v356
    %v424 = vsel %vm194, %v66, %v358
    %v427 = vsel %vm194, %v67, %v360
    %v430 = vsel %vm194, %v68, %v362
    %v432 = vsel %vm207, %v421, %v364
    %v434 = vsel %vm207, %v424, %v366
    %v436 = vsel %vm207, %v427, %v368
    %v438 = vsel %vm207, %v430, %v370
    %v440 = vsel %vm216, %v432, %v412
    %v442 = vsel %vm216, %v434, %v414
    %v444 = vsel %vm216, %v436, %v416
    %v446 = vsel %vm216, %v438, %v418
    %v452 = vunpack.c.l.s4 1983009808
    %v453 = vunpack.c.0.s8 %v452
    %v454 = vlaneseq
    %v455 = vshrl.u32 %v454, 7
    %v456 = vsub.s32 %v453, %v455
    %v457 = vrot.slane %v440, %v456
    %v458 = vcombine.high %v457, %v457
    %v460 = vunpack.c.l.s4 1983009808
    %v461 = vunpack.c.0.s8 %v460
    %v462 = vlaneseq
    %v463 = vshrl.u32 %v462, 7
    %v464 = vsub.s32 %v461, %v463
    %v465 = vrot.slane %v442, %v464
    %v466 = vcombine.high %v465, %v465
    %v468 = vunpack.c.l.s4 1983009808
    %v469 = vunpack.c.0.s8 %v468
    %v470 = vlaneseq
    %v471 = vshrl.u32 %v470, 7
    %v472 = vsub.s32 %v469, %v471
    %v473 = vrot.slane %v444, %v472
    %v474 = vcombine.high %v473, %v473
    %v476 = vunpack.c.l.s4 1983009808
    %v477 = vunpack.c.0.s8 %v476
    %v478 = vlaneseq
    %v479 = vshrl.u32 %v478, 7
    %v480 = vsub.s32 %v477, %v479
    %v481 = vrot.slane %v446, %v480
    %v482 = vcombine.high %v481, %v481
    %vm483 = vsmask.f32 1280
    %vm484 = vsmask.f32 3336
    %vm485 = vmor %vm483, %vm484
    %vm486 = vsmask.f32 5392
    %vm487 = vmor %vm485, %vm486
    %vm488 = vsmask.f32 7448
    %vm489 = vmor %vm487, %vm488
    %v491 = vshrl.u32 %v457, 16
    %v493 = vrot.slane %v491, 6
    %v494 = vshll.u32 %v457, 16
    %v496 = vrot.slane %v494, 7
    %v497 = vor.u32 %v493, %v496
    %v498 = vrot.slane %v497, 2
    %v500 = vshll.u32 %v458, 16
    %v502 = vrot.slane %v500, 7
    %v503 = vsel %vm489, %v498, %v502
    %v505 = vshrl.u32 %v465, 16
    %v507 = vrot.slane %v505, 6
    %v508 = vshll.u32 %v465, 16
    %v510 = vrot.slane %v508, 7
    %v511 = vor.u32 %v507, %v510
    %v512 = vrot.slane %v511, 2
    %v514 = vshll.u32 %v466, 16
    %v516 = vrot.slane %v514, 7
    %v517 = vsel %vm489, %v512, %v516
    %v519 = vshrl.u32 %v473, 16
    %v521 = vrot.slane %v519, 6
    %v522 = vshll.u32 %v473, 16
    %v524 = vrot.slane %v522, 7
    %v525 = vor.u32 %v521, %v524
    %v526 = vrot.slane %v525, 2
    %v528 = vshll.u32 %v474, 16
    %v530 = vrot.slane %v528, 7
    %v531 = vsel %vm489, %v526, %v530
    %v533 = vshrl.u32 %v481, 16
    %v535 = vrot.slane %v533, 6
    %v536 = vshll.u32 %v481, 16
    %v538 = vrot.slane %v536, 7
    %v539 = vor.u32 %v535, %v538
    %v540 = vrot.slane %v539, 2
    %v542 = vshll.u32 %v482, 16
    %v544 = vrot.slane %v542, 7
    %v545 = vsel %vm489, %v540, %v544
    %s546 = scalar_lea.vmem %s2, 16
    %v547 = vld [vmem:[%s546] sm:$0xf]
    %v548 = vld [vmem:[%s546 + $0x4] sm:$0xf]
    %v549 = vld [vmem:[%s546 + $0x8] sm:$0xf]
    %v550 = vld [vmem:[%s546 + $0xc] sm:$0xf]
    %v551 = vcombine.low %v503, %v517
    %v552 = vcombine.low %v531, %v545
    %v554 = vunpack.c.l.s4 1983009808
    %v555 = vunpack.c.0.s8 %v554
    %v556 = vlaneseq
    %v557 = vshrl.u32 %v556, 7
    %v558 = vsub.s32 %v555, %v557
    %v559 = vrot.slane %v551, %v558
    %v561 = vunpack.c.l.s4 1983009808
    %v562 = vunpack.c.0.s8 %v561
    %v563 = vlaneseq
    %v564 = vshrl.u32 %v563, 7
    %v565 = vsub.s32 %v562, %v564
    %v566 = vrot.slane %v552, %v565
    %v567 = vcombine.low %v559, %v566
    %v572 = vunpack.c.l.b16 %v547
    %v573 = vunpack.c.l.b16 %v548
    %v574 = vunpack.c.l.b16 %v549
    %v575 = vunpack.c.l.b16 %v550
    %v576 = vpack.c.b16 %v573, %v572
    %v577 = vpack.c.b16 %v575, %v574
    %v581 = vsel %vm262, %v567, 0
    %583 = vmatprep.subr.bf16.mxu0 0
    %584 = vmatpush1.bf16.msra.mxu0 %v576
    %585 = vmatprep.subr.bf16.mxu0 0
    %586 = vmatpush1.bf16.msra.mxu0 %v577
    %587 = vmatprep.subr.bf16.mxu0 0
    %588 = vmatpush1.bf16.msra.mxu0 0
    %589 = vmatprep.subr.bf16.mxu0 0
    %590 = vmatpush1.bf16.msra.mxu0 0
    %591 = vmatprep.subr.bf16.mxu0 0
    %592 = vmatpush1.bf16.msra.mxu0 0
    %593 = vmatprep.subr.bf16.mxu0 0
    %594 = vmatpush1.bf16.msra.mxu0 0
    %595 = vmatprep.subr.bf16.mxu0 0
    %596 = vmatpush1.bf16.msra.mxu0 0
    %597 = vmatprep.subr.bf16.mxu0 0
    %598 = vmatpush1.bf16.msra.mxu0 0
    %599 = vmatprep.subr.bf16.mxu0 0
    %600 = vmatpush1.bf16.msra.mxu0 0
    %601 = vmatprep.subr.bf16.mxu0 0
    %602 = vmatpush1.bf16.msra.mxu0 0
    %603 = vmatprep.subr.bf16.mxu0 0
    %604 = vmatpush1.bf16.msra.mxu0 0
    %605 = vmatprep.subr.bf16.mxu0 0
    %606 = vmatpush1.bf16.msra.mxu0 0
    %607 = vmatprep.subr.bf16.mxu0 0
    %608 = vmatpush1.bf16.msra.mxu0 0
    %609 = vmatprep.subr.bf16.mxu0 0
    %610 = vmatpush1.bf16.msra.mxu0 0
    %611 = vmatprep.subr.bf16.mxu0 0
    %612 = vmatpush1.bf16.msra.mxu0 0
    %613 = vmatprep.subr.bf16.mxu0 0
    %614 = vmatpush1.bf16.msra.mxu0 0
    %615 = vmatprep.mubr.bf16.mxu0 0
    %616 = vmatmul.mubr.bf16.gmra.mrb[0].mxu0 %v581
    %v617 = vpop.f32.mrb[0].mxu0
    %v618 = vadd.f32 0.0, %v617
    %v619 = vpop.f32.mrb[0].mxu0
    %v620 = vpop.f32.mrb[0].mxu0
    %v621 = vadd.f32 0.0, %v620
    %v622 = vpop.f32.mrb[0].mxu0
    %623 = vdwg.mxu0
    %626 = vrot.lane.b32.xlu0 %v618, 16
    %v627 = vpop.permute.xlu0 %626
    %628 = vrot.lane.b32.xlu0 %v621, 16
    %v629 = vpop.permute.xlu0 %628
    %v632 = vsel %vm207, %v301, %v627
    %v633 = vsel %vm207, %v304, %v629
    %v635 = vlaneseq
    %v636 = vshrl.u32 %v635, 7
    %v637 = vsub.s32 0, %v636
    %v638 = vrot.slane %v60, %v637
    %v640 = vadd.f32 %v632, %v638
    %v641 = vadd.f32 %v633, %v638
    %v644 = vcombine.high %v640, %v640
    %v645 = vcombine.high %v641, %v641
    %vm648 = vcmask 257024
    %649 = vst.msk [vmem:[#allocation3] sm:$0xf] %vm648, %v640
    %650 = vst.msk [vmem:[#allocation3 + $0x8] sm:$0xf] %vm648, %v644
    %651 = vst.msk [vmem:[#allocation3 + $0x10] sm:$0xf] %vm648, %v641
    %652 = vst.msk [vmem:[#allocation3 + $0x18] sm:$0xf] %vm648, %v645
    %v653 = vld [vmem:[%s69] sm:$0x3]
    %v654 = vld [vmem:[%s69 + $0x4] sm:$0x3]
    %v655 = vld [vmem:[%s69 + $0x8] sm:$0x3]
    %v656 = vld [vmem:[%s69 + $0xc] sm:$0x3]
    %v657 = vld [vmem:[%s69] sm:$0x7]
    %v658 = vld [vmem:[%s69 + $0x4] sm:$0x7]
    %v659 = vld [vmem:[%s69 + $0x8] sm:$0x7]
    %v660 = vld [vmem:[%s69 + $0xc] sm:$0x7]
    %s661 = scalar_lea.vmem [#allocation2], 8
    %v662 = vld [vmem:[%s661] sm:$0x3]
    %v663 = vld [vmem:[%s661 + $0x4] sm:$0x3]
    %v664 = vld [vmem:[%s661 + $0x8] sm:$0x3]
    %v665 = vld [vmem:[%s661 + $0xc] sm:$0x3]
    %v666 = vld [vmem:[%s661] sm:$0x7]
    %v667 = vld [vmem:[%s661 + $0x4] sm:$0x7]
    %v668 = vld [vmem:[%s661 + $0x8] sm:$0x7]
    %v669 = vld [vmem:[%s661 + $0xc] sm:$0x7]
    %v674 = vunpack.c.l.b16 %v657
    %v675 = vunpack.c.l.b16 %v658
    %v676 = vunpack.c.l.b16 %v659
    %v677 = vunpack.c.l.b16 %v660
    %v678 = vpack.c.b16 %v674, %v674
    %v679 = vpack.c.b16 %v675, %v675
    %v680 = vpack.c.b16 %v676, %v676
    %v681 = vpack.c.b16 %v677, %v677
    %v683 = vshrl.u32 %v678, 16
    %v685 = vshll.u32 %v678, 16
    %v687 = vrot.slane %v685, 1
    %v688 = vor.u32 %v683, %v687
    %v690 = vshrl.u32 %v679, 16
    %v692 = vshll.u32 %v679, 16
    %v694 = vrot.slane %v692, 1
    %v695 = vor.u32 %v690, %v694
    %v697 = vshrl.u32 %v680, 16
    %v699 = vshll.u32 %v680, 16
    %v701 = vrot.slane %v699, 1
    %v702 = vor.u32 %v697, %v701
    %v704 = vshrl.u32 %v681, 16
    %v706 = vshll.u32 %v681, 16
    %v708 = vrot.slane %v706, 1
    %v709 = vor.u32 %v704, %v708
    %710 = vrot.lane.b32.xlu0 %v688, 8
    %v711 = vpop.permute.xlu0 %710
    %712 = vrot.lane.b32.xlu0 %v695, 8
    %v713 = vpop.permute.xlu0 %712
    %714 = vrot.lane.b32.xlu0 %v702, 8
    %v715 = vpop.permute.xlu0 %714
    %716 = vrot.lane.b32.xlu0 %v709, 8
    %v717 = vpop.permute.xlu0 %716
    %v722 = vunpack.c.l.b16 %v662
    %v723 = vunpack.c.l.b16 %v663
    %v724 = vunpack.c.l.b16 %v664
    %v725 = vunpack.c.l.b16 %v665
    %v726 = vpack.c.b16 %v722, %v722
    %v727 = vpack.c.b16 %v723, %v723
    %v728 = vpack.c.b16 %v724, %v724
    %v729 = vpack.c.b16 %v725, %v725
    %730 = vrot.lane.b32.xlu0 %v726, 16
    %v731 = vpop.permute.xlu0 %730
    %732 = vrot.lane.b32.xlu0 %v727, 16
    %v733 = vpop.permute.xlu0 %732
    %734 = vrot.lane.b32.xlu0 %v728, 16
    %v735 = vpop.permute.xlu0 %734
    %736 = vrot.lane.b32.xlu0 %v729, 16
    %v737 = vpop.permute.xlu0 %736
    %v742 = vunpack.c.l.b16 %v666
    %v743 = vunpack.c.l.b16 %v667
    %v744 = vunpack.c.l.b16 %v668
    %v745 = vunpack.c.l.b16 %v669
    %v746 = vpack.c.b16 %v742, %v742
    %v747 = vpack.c.b16 %v743, %v743
    %v748 = vpack.c.b16 %v744, %v744
    %v749 = vpack.c.b16 %v745, %v745
    %v751 = vshrl.u32 %v746, 16
    %v753 = vshll.u32 %v746, 16
    %v755 = vrot.slane %v753, 1
    %v756 = vor.u32 %v751, %v755
    %v758 = vshrl.u32 %v747, 16
    %v760 = vshll.u32 %v747, 16
    %v762 = vrot.slane %v760, 1
    %v763 = vor.u32 %v758, %v762
    %v765 = vshrl.u32 %v748, 16
    %v767 = vshll.u32 %v748, 16
    %v769 = vrot.slane %v767, 1
    %v770 = vor.u32 %v765, %v769
    %v772 = vshrl.u32 %v749, 16
    %v774 = vshll.u32 %v749, 16
    %v776 = vrot.slane %v774, 1
    %v777 = vor.u32 %v772, %v776
    %778 = vrot.lane.b32.xlu0 %v756, 24
    %v779 = vpop.permute.xlu0 %778
    %780 = vrot.lane.b32.xlu0 %v763, 24
    %v781 = vpop.permute.xlu0 %780
    %782 = vrot.lane.b32.xlu0 %v770, 24
    %v783 = vpop.permute.xlu0 %782
    %784 = vrot.lane.b32.xlu0 %v777, 24
    %v785 = vpop.permute.xlu0 %784
    %v788 = vsel %vm194, %v653, %v711
    %v791 = vsel %vm194, %v654, %v713
    %v794 = vsel %vm194, %v655, %v715
    %v797 = vsel %vm194, %v656, %v717
    %v799 = vsel %vm207, %v788, %v731
    %v801 = vsel %vm207, %v791, %v733
    %v803 = vsel %vm207, %v794, %v735
    %v805 = vsel %vm207, %v797, %v737
    %v807 = vsel %vm216, %v799, %v779
    %v809 = vsel %vm216, %v801, %v781
    %v811 = vsel %vm216, %v803, %v783
    %v813 = vsel %vm216, %v805, %v785
    %s814 = scalar_lea.vmem %s2, 32
    %v815 = vld [vmem:[%s814] sm:$0xf]
    %v816 = vld [vmem:[%s814 + $0x4] sm:$0xf]
    %v817 = vld [vmem:[%s814 + $0x8] sm:$0xf]
    %v818 = vld [vmem:[%s814 + $0xc] sm:$0xf]
    %v823 = vcombine.low %v807, %v809
    %v824 = vcombine.low %v811, %v813
    %v826 = vunpack.c.l.s4 1983009808
    %v827 = vunpack.c.0.s8 %v826
    %v828 = vlaneseq
    %v829 = vshrl.u32 %v828, 7
    %v830 = vsub.s32 %v827, %v829
    %v831 = vrot.slane %v823, %v830
    %v833 = vunpack.c.l.s4 1983009808
    %v834 = vunpack.c.0.s8 %v833
    %v835 = vlaneseq
    %v836 = vshrl.u32 %v835, 7
    %v837 = vsub.s32 %v834, %v836
    %v838 = vrot.slane %v824, %v837
    %v839 = vcombine.low %v831, %v838
    %v844 = vunpack.c.l.b16 %v815
    %v845 = vunpack.c.l.b16 %v816
    %v846 = vunpack.c.l.b16 %v817
    %v847 = vunpack.c.l.b16 %v818
    %v848 = vpack.c.b16 %v845, %v844
    %v849 = vpack.c.b16 %v847, %v846
    %v853 = vsel %vm262, %v839, 0
    %855 = vmatprep.subr.bf16.mxu0 0
    %856 = vmatpush1.bf16.msra.mxu0 %v848
    %857 = vmatprep.subr.bf16.mxu0 0
    %858 = vmatpush1.bf16.msra.mxu0 %v849
    %859 = vmatprep.subr.bf16.mxu0 0
    %860 = vmatpush1.bf16.msra.mxu0 0
    %861 = vmatprep.subr.bf16.mxu0 0
    %862 = vmatpush1.bf16.msra.mxu0 0
    %863 = vmatprep.subr.bf16.mxu0 0
    %864 = vmatpush1.bf16.msra.mxu0 0
    %865 = vmatprep.subr.bf16.mxu0 0
    %866 = vmatpush1.bf16.msra.mxu0 0
    %867 = vmatprep.subr.bf16.mxu0 0
    %868 = vmatpush1.bf16.msra.mxu0 0
    %869 = vmatprep.subr.bf16.mxu0 0
    %870 = vmatpush1.bf16.msra.mxu0 0
    %871 = vmatprep.subr.bf16.mxu0 0
    %872 = vmatpush1.bf16.msra.mxu0 0
    %873 = vmatprep.subr.bf16.mxu0 0
    %874 = vmatpush1.bf16.msra.mxu0 0
    %875 = vmatprep.subr.bf16.mxu0 0
    %876 = vmatpush1.bf16.msra.mxu0 0
    %877 = vmatprep.subr.bf16.mxu0 0
    %878 = vmatpush1.bf16.msra.mxu0 0
    %879 = vmatprep.subr.bf16.mxu0 0
    %880 = vmatpush1.bf16.msra.mxu0 0
    %881 = vmatprep.subr.bf16.mxu0 0
    %882 = vmatpush1.bf16.msra.mxu0 0
    %883 = vmatprep.subr.bf16.mxu0 0
    %884 = vmatpush1.bf16.msra.mxu0 0
    %885 = vmatprep.subr.bf16.mxu0 0
    %886 = vmatpush1.bf16.msra.mxu0 0
    %887 = vmatprep.mubr.bf16.mxu0 0
    %888 = vmatmul.mubr.bf16.gmra.mrb[0].mxu0 %v853
    %v889 = vpop.f32.mrb[0].mxu0
    %v890 = vadd.f32 0.0, %v889
    %v891 = vpop.f32.mrb[0].mxu0
    %v892 = vpop.f32.mrb[0].mxu0
    %v893 = vadd.f32 0.0, %v892
    %v894 = vpop.f32.mrb[0].mxu0
    %895 = vdwg.mxu0
    %v896 = vld [vmem:[%s69] sm:$0x6]
    %v897 = vld [vmem:[%s69 + $0x4] sm:$0x6]
    %v898 = vld [vmem:[%s69 + $0x8] sm:$0x6]
    %v899 = vld [vmem:[%s69 + $0xc] sm:$0x6]
    %v900 = vld [vmem:[%s661] sm:$0x6]
    %v901 = vld [vmem:[%s661 + $0x4] sm:$0x6]
    %v902 = vld [vmem:[%s661 + $0x8] sm:$0x6]
    %v903 = vld [vmem:[%s661 + $0xc] sm:$0x6]
    %v908 = vunpack.c.l.b16 %v896
    %v909 = vunpack.c.l.b16 %v897
    %v910 = vunpack.c.l.b16 %v898
    %v911 = vunpack.c.l.b16 %v899
    %v912 = vpack.c.b16 %v908, %v908
    %v913 = vpack.c.b16 %v909, %v909
    %v914 = vpack.c.b16 %v910, %v910
    %v915 = vpack.c.b16 %v911, %v911
    %v917 = vshrl.u32 %v912, 16
    %v919 = vshll.u32 %v912, 16
    %v921 = vrot.slane %v919, 1
    %v922 = vor.u32 %v917, %v921
    %v924 = vshrl.u32 %v913, 16
    %v926 = vshll.u32 %v913, 16
    %v928 = vrot.slane %v926, 1
    %v929 = vor.u32 %v924, %v928
    %v931 = vshrl.u32 %v914, 16
    %v933 = vshll.u32 %v914, 16
    %v935 = vrot.slane %v933, 1
    %v936 = vor.u32 %v931, %v935
    %v938 = vshrl.u32 %v915, 16
    %v940 = vshll.u32 %v915, 16
    %v942 = vrot.slane %v940, 1
    %v943 = vor.u32 %v938, %v942
    %944 = vrot.lane.b32.xlu0 %v922, 8
    %v945 = vpop.permute.xlu0 %944
    %946 = vrot.lane.b32.xlu0 %v929, 8
    %v947 = vpop.permute.xlu0 %946
    %948 = vrot.lane.b32.xlu0 %v936, 8
    %v949 = vpop.permute.xlu0 %948
    %950 = vrot.lane.b32.xlu0 %v943, 8
    %v951 = vpop.permute.xlu0 %950
    %952 = vrot.lane.b32.xlu0 %v746, 16
    %v953 = vpop.permute.xlu0 %952
    %954 = vrot.lane.b32.xlu0 %v747, 16
    %v955 = vpop.permute.xlu0 %954
    %956 = vrot.lane.b32.xlu0 %v748, 16
    %v957 = vpop.permute.xlu0 %956
    %958 = vrot.lane.b32.xlu0 %v749, 16
    %v959 = vpop.permute.xlu0 %958
    %v964 = vunpack.c.l.b16 %v900
    %v965 = vunpack.c.l.b16 %v901
    %v966 = vunpack.c.l.b16 %v902
    %v967 = vunpack.c.l.b16 %v903
    %v968 = vpack.c.b16 %v964, %v964
    %v969 = vpack.c.b16 %v965, %v965
    %v970 = vpack.c.b16 %v966, %v966
    %v971 = vpack.c.b16 %v967, %v967
    %v973 = vshrl.u32 %v968, 16
    %v975 = vshll.u32 %v968, 16
    %v977 = vrot.slane %v975, 1
    %v978 = vor.u32 %v973, %v977
    %v980 = vshrl.u32 %v969, 16
    %v982 = vshll.u32 %v969, 16
    %v984 = vrot.slane %v982, 1
    %v985 = vor.u32 %v980, %v984
    %v987 = vshrl.u32 %v970, 16
    %v989 = vshll.u32 %v970, 16
    %v991 = vrot.slane %v989, 1
    %v992 = vor.u32 %v987, %v991
    %v994 = vshrl.u32 %v971, 16
    %v996 = vshll.u32 %v971, 16
    %v998 = vrot.slane %v996, 1
    %v999 = vor.u32 %v994, %v998
    %1000 = vrot.lane.b32.xlu0 %v978, 24
    %v1001 = vpop.permute.xlu0 %1000
    %1002 = vrot.lane.b32.xlu0 %v985, 24
    %v1003 = vpop.permute.xlu0 %1002
    %1004 = vrot.lane.b32.xlu0 %v992, 24
    %v1005 = vpop.permute.xlu0 %1004
    %1006 = vrot.lane.b32.xlu0 %v999, 24
    %v1007 = vpop.permute.xlu0 %1006
    %v1010 = vsel %vm194, %v657, %v945
    %v1013 = vsel %vm194, %v658, %v947
    %v1016 = vsel %vm194, %v659, %v949
    %v1019 = vsel %vm194, %v660, %v951
    %v1021 = vsel %vm207, %v1010, %v953
    %v1023 = vsel %vm207, %v1013, %v955
    %v1025 = vsel %vm207, %v1016, %v957
    %v1027 = vsel %vm207, %v1019, %v959
    %v1029 = vsel %vm216, %v1021, %v1001
    %v1031 = vsel %vm216, %v1023, %v1003
    %v1033 = vsel %vm216, %v1025, %v1005
    %v1035 = vsel %vm216, %v1027, %v1007
    %v1041 = vunpack.c.l.s4 1983009808
    %v1042 = vunpack.c.0.s8 %v1041
    %v1043 = vlaneseq
    %v1044 = vshrl.u32 %v1043, 7
    %v1045 = vsub.s32 %v1042, %v1044
    %v1046 = vrot.slane %v1029, %v1045
    %v1047 = vcombine.high %v1046, %v1046
    %v1049 = vunpack.c.l.s4 1983009808
    %v1050 = vunpack.c.0.s8 %v1049
    %v1051 = vlaneseq
    %v1052 = vshrl.u32 %v1051, 7
    %v1053 = vsub.s32 %v1050, %v1052
    %v1054 = vrot.slane %v1031, %v1053
    %v1055 = vcombine.high %v1054, %v1054
    %v1057 = vunpack.c.l.s4 1983009808
    %v1058 = vunpack.c.0.s8 %v1057
    %v1059 = vlaneseq
    %v1060 = vshrl.u32 %v1059, 7
    %v1061 = vsub.s32 %v1058, %v1060
    %v1062 = vrot.slane %v1033, %v1061
    %v1063 = vcombine.high %v1062, %v1062
    %v1065 = vunpack.c.l.s4 1983009808
    %v1066 = vunpack.c.0.s8 %v1065
    %v1067 = vlaneseq
    %v1068 = vshrl.u32 %v1067, 7
    %v1069 = vsub.s32 %v1066, %v1068
    %v1070 = vrot.slane %v1035, %v1069
    %v1071 = vcombine.high %v1070, %v1070
    %v1073 = vshrl.u32 %v1046, 16
    %v1075 = vrot.slane %v1073, 6
    %v1076 = vshll.u32 %v1046, 16
    %v1078 = vrot.slane %v1076, 7
    %v1079 = vor.u32 %v1075, %v1078
    %v1080 = vrot.slane %v1079, 2
    %v1082 = vshll.u32 %v1047, 16
    %v1084 = vrot.slane %v1082, 7
    %v1085 = vsel %vm489, %v1080, %v1084
    %v1087 = vshrl.u32 %v1054, 16
    %v1089 = vrot.slane %v1087, 6
    %v1090 = vshll.u32 %v1054, 16
    %v1092 = vrot.slane %v1090, 7
    %v1093 = vor.u32 %v1089, %v1092
    %v1094 = vrot.slane %v1093, 2
    %v1096 = vshll.u32 %v1055, 16
    %v1098 = vrot.slane %v1096, 7
    %v1099 = vsel %vm489, %v1094, %v1098
    %v1101 = vshrl.u32 %v1062, 16
    %v1103 = vrot.slane %v1101, 6
    %v1104 = vshll.u32 %v1062, 16
    %v1106 = vrot.slane %v1104, 7
    %v1107 = vor.u32 %v1103, %v1106
    %v1108 = vrot.slane %v1107, 2
    %v1110 = vshll.u32 %v1063, 16
    %v1112 = vrot.slane %v1110, 7
    %v1113 = vsel %vm489, %v1108, %v1112
    %v1115 = vshrl.u32 %v1070, 16
    %v1117 = vrot.slane %v1115, 6
    %v1118 = vshll.u32 %v1070, 16
    %v1120 = vrot.slane %v1118, 7
    %v1121 = vor.u32 %v1117, %v1120
    %v1122 = vrot.slane %v1121, 2
    %v1124 = vshll.u32 %v1071, 16
    %v1126 = vrot.slane %v1124, 7
    %v1127 = vsel %vm489, %v1122, %v1126
    %s1128 = scalar_lea.vmem %s2, 48
    %v1129 = vld [vmem:[%s1128] sm:$0xf]
    %v1130 = vld [vmem:[%s1128 + $0x4] sm:$0xf]
    %v1131 = vld [vmem:[%s1128 + $0x8] sm:$0xf]
    %v1132 = vld [vmem:[%s1128 + $0xc] sm:$0xf]
    %v1133 = vcombine.low %v1085, %v1099
    %v1134 = vcombine.low %v1113, %v1127
    %v1136 = vunpack.c.l.s4 1983009808
    %v1137 = vunpack.c.0.s8 %v1136
    %v1138 = vlaneseq
    %v1139 = vshrl.u32 %v1138, 7
    %v1140 = vsub.s32 %v1137, %v1139
    %v1141 = vrot.slane %v1133, %v1140
    %v1143 = vunpack.c.l.s4 1983009808
    %v1144 = vunpack.c.0.s8 %v1143
    %v1145 = vlaneseq
    %v1146 = vshrl.u32 %v1145, 7
    %v1147 = vsub.s32 %v1144, %v1146
    %v1148 = vrot.slane %v1134, %v1147
    %v1149 = vcombine.low %v1141, %v1148
    %v1154 = vunpack.c.l.b16 %v1129
    %v1155 = vunpack.c.l.b16 %v1130
    %v1156 = vunpack.c.l.b16 %v1131
    %v1157 = vunpack.c.l.b16 %v1132
    %v1158 = vpack.c.b16 %v1155, %v1154
    %v1159 = vpack.c.b16 %v1157, %v1156
    %v1163 = vsel %vm262, %v1149, 0
    %1165 = vmatprep.subr.bf16.mxu0 0
    %1166 = vmatpush1.bf16.msra.mxu0 %v1158
    %1167 = vmatprep.subr.bf16.mxu0 0
    %1168 = vmatpush1.bf16.msra.mxu0 %v1159
    %1169 = vmatprep.subr.bf16.mxu0 0
    %1170 = vmatpush1.bf16.msra.mxu0 0
    %1171 = vmatprep.subr.bf16.mxu0 0
    %1172 = vmatpush1.bf16.msra.mxu0 0
    %1173 = vmatprep.subr.bf16.mxu0 0
    %1174 = vmatpush1.bf16.msra.mxu0 0
    %1175 = vmatprep.subr.bf16.mxu0 0
    %1176 = vmatpush1.bf16.msra.mxu0 0
    %1177 = vmatprep.subr.bf16.mxu0 0
    %1178 = vmatpush1.bf16.msra.mxu0 0
    %1179 = vmatprep.subr.bf16.mxu0 0
    %1180 = vmatpush1.bf16.msra.mxu0 0
    %1181 = vmatprep.subr.bf16.mxu0 0
    %1182 = vmatpush1.bf16.msra.mxu0 0
    %1183 = vmatprep.subr.bf16.mxu0 0
    %1184 = vmatpush1.bf16.msra.mxu0 0
    %1185 = vmatprep.subr.bf16.mxu0 0
    %1186 = vmatpush1.bf16.msra.mxu0 0
    %1187 = vmatprep.subr.bf16.mxu0 0
    %1188 = vmatpush1.bf16.msra.mxu0 0
    %1189 = vmatprep.subr.bf16.mxu0 0
    %1190 = vmatpush1.bf16.msra.mxu0 0
    %1191 = vmatprep.subr.bf16.mxu0 0
    %1192 = vmatpush1.bf16.msra.mxu0 0
    %1193 = vmatprep.subr.bf16.mxu0 0
    %1194 = vmatpush1.bf16.msra.mxu0 0
    %1195 = vmatprep.subr.bf16.mxu0 0
    %1196 = vmatpush1.bf16.msra.mxu0 0
    %1197 = vmatprep.mubr.bf16.mxu0 0
    %1198 = vmatmul.mubr.bf16.gmra.mrb[0].mxu0 %v1163
    %v1199 = vpop.f32.mrb[0].mxu0
    %v1200 = vadd.f32 0.0, %v1199
    %v1201 = vpop.f32.mrb[0].mxu0
    %v1202 = vpop.f32.mrb[0].mxu0
    %v1203 = vadd.f32 0.0, %v1202
    %v1204 = vpop.f32.mrb[0].mxu0
    %1205 = vdwg.mxu0
    %1208 = vrot.lane.b32.xlu0 %v1200, 16
    %v1209 = vpop.permute.xlu0 %1208
    %1210 = vrot.lane.b32.xlu0 %v1203, 16
    %v1211 = vpop.permute.xlu0 %1210
    %v1214 = vsel %vm207, %v890, %v1209
    %v1215 = vsel %vm207, %v893, %v1211
    %v1216 = vadd.f32 %v1214, %v638
    %v1217 = vadd.f32 %v1215, %v638
    %v1220 = vcombine.high %v1216, %v1216
    %v1221 = vcombine.high %v1217, %v1217
    %s1224 = scalar_lea.vmem [#allocation3], 4
    %1225 = vst.msk [vmem:[%s1224] sm:$0xf] %vm648, %v1216
    %1226 = vst.msk [vmem:[%s1224 + $0x8] sm:$0xf] %vm648, %v1220
    %1227 = vst.msk [vmem:[%s1224 + $0x10] sm:$0xf] %vm648, %v1217
    %1228 = vst.msk [vmem:[%s1224 + $0x18] sm:$0xf] %vm648, %v1221
    // Predicated region
    $region18: #{tpu_custom_call.1} parent=1 // pred_check
      _
    $region19: #{tpu_custom_call.1} parent=1 // pred_check_branch
      %1230 = sbr.rel (0) target = $region21
    $region20: #{tpu_custom_call.1} parent=1 // pred_region
      %s1232 = ssub.s32 512, 512
      %1233 = vsyncadd [#allocation4], %s1232
      %s1234 = sshll.u32 [#allocation3], 4
      %s1235 = int_to_ptr.vmem [resolvable:$true] %s1234
      %1240 = dma.vmem_to_hbm [thread:$0]  %s1235, 512, %s4, [#allocation4], 64, 64, 4
    $region21: #{tpu_custom_call.1} parent=1 // pred_fallthru
      _
    // Predicated region
    $region22: #{tpu_custom_call.1} parent=1 // pred_check
      _
    $region23: #{tpu_custom_call.1} parent=1 // pred_check_branch
      %1242 = sbr.rel (0) target = $region25
    $region24: #{tpu_custom_call.1} parent=1 // pred_region
      %1243 = dma.done [#allocation4], 512
    $region25: #{tpu_custom_call.1} parent=1 // pred_fallthru
      _
    %1244 = vsyncpa [#allocation4], 1

</llo_original>
